<compile_context>
chip_gen: v7x
topology: tpu7x:2x2x1
jax: 0.10.0
libtpu: 0.0.40
codegen_flags: <defaults>
</compile_context>

<pallas_src>
import jax
import jax.numpy as jnp
from jax.experimental import pallas as pl
from jax.experimental.pallas import tpu as pltpu

EPS = 1e-5
VMEM_LIMIT_BYTES = 32 * 1024 * 1024   # within the scoped default on v5e/v6e/v7x


def _compiler_params():
    return pltpu.CompilerParams(
        dimension_semantics=("parallel",),
        vmem_limit_bytes=VMEM_LIMIT_BYTES,
    )


# ----------------------------- Pallas kernels ------------------------------ #

def _matmul_stats_kernel(p_ref, w_ref, raw_ref, stats_ref):
    """raw = W @ P (f32 accumulate) + per-output-row partial (sum, sum_sq).

    Per grid step:
      p_ref    : (K, tm)      compute dtype, tm lane-dense (multiple of 128)
      w_ref    : (R, K)       compute dtype (weights; resident every step)
      raw_ref  : (R, tm)      f32  raw (un-normalized) conv output tile
      stats_ref: (1, 2, R, 1) f32  this tile's partial moments
    """
    acc = jnp.dot(w_ref[...], p_ref[...], preferred_element_type=jnp.float32)
    raw_ref[...] = acc.astype(raw_ref.dtype)
    # One reduction sweep per moment (cross-lane reduce -> XLU, cheap).
    stats_ref[0, 0, :, :] = jnp.sum(acc, axis=1, keepdims=True)
    stats_ref[0, 1, :, :] = jnp.sum(acc * acc, axis=1, keepdims=True)


def _bn_add_relu_kernel(c_ref, r_ref, ac_ref, bc_ref, ar_ref, br_ref, o_ref):
    """out = relu( a_c*conv_raw + b_c + a_r*res_raw + b_r )   (all f32 math)."""
    c = c_ref[...].astype(jnp.float32)
    r = r_ref[...].astype(jnp.float32)
    y = ac_ref[...] * c + bc_ref[...] + ar_ref[...] * r + br_ref[...]
    o_ref[...] = jnp.maximum(y, 0.0)


# ----------------------------- Pallas wrappers ----------------------------- #

def _pick_tile_m(m, block_m):
    """Largest lane tile (multiple of 128) <= block_m that divides m, else m."""
    if m <= block_m:
        return m
    t = (block_m // 128) * 128
    while t >= 128:
        if m % t == 0:
            return t
        t -= 128
    return m


def matmul_with_stats(p, w, *, block_m):
    """Lane-tiled raw = w @ p plus per-row partial moments (two-pass BN, pass 1)."""
    K, M = p.shape
    R = w.shape[0]
    tm = _pick_tile_m(M, block_m)
    n_tiles = M // tm
    raw, stats = pl.pallas_call(
        _matmul_stats_kernel,
        out_shape=(
            jax.ShapeDtypeStruct((R, M), jnp.float32),
            jax.ShapeDtypeStruct((n_tiles, 2, R, 1), jnp.float32),
        ),
        grid=(n_tiles,),
        in_specs=[
            pl.BlockSpec((K, tm), lambda i: (0, i)),
            pl.BlockSpec((R, K), lambda i: (0, 0)),
        ],
        out_specs=(
            pl.BlockSpec((R, tm), lambda i: (0, i)),
            pl.BlockSpec((1, 2, R, 1), lambda i: (i, 0, 0, 0)),
        ),
        compiler_params=_compiler_params(),
    )(p, w)
    return raw, stats


def bn_add_relu(conv_raw, res, a_c, b_c, a_r, b_r, *, res_block_row, block_m):
    """Two-pass BN, pass 2: scale/shift + residual add + ReLU, lane-tiled."""
    P, M = conv_raw.shape
    tm = _pick_tile_m(M, block_m)
    n_tiles = M // tm
    coeff_spec = pl.BlockSpec((P, 1), lambda i: (0, 0))
    return pl.pallas_call(
        _bn_add_relu_kernel,
        out_shape=jax.ShapeDtypeStruct((P, M), jnp.float32),
        grid=(n_tiles,),
        in_specs=[
            pl.BlockSpec((P, tm), lambda i: (0, i)),
            # residual rows are picked by block index (1 = projection rows of
            # the fused conv1 output, 0 = identity input) -> no wrapper slice.
            pl.BlockSpec((P, tm), lambda i: (res_block_row, i)),
            coeff_spec, coeff_spec, coeff_spec, coeff_spec,
        ],
        out_specs=pl.BlockSpec((P, tm), lambda i: (0, i)),
        compiler_params=_compiler_params(),
    )(conv_raw, res, a_c, b_c, a_r, b_r)


# ------------------------------- JAX glue ---------------------------------- #

def im2col_cfirst(xc, ksize, stride, pad):
    """Channel-first im2col: (C, N, H, W) -> (ksize*ksize*C, N*Ho*Wo).

    Row order is tap-major / channel-minor: row = (ky*ksize + kx)*C + c.
    """
    C, N, H, W = xc.shape
    Ho = (H + 2 * pad - ksize) // stride + 1
    Wo = (W + 2 * pad - ksize) // stride + 1
    xp = jnp.pad(xc, ((0, 0), (0, 0), (pad, pad), (pad, pad)))
    taps = []
    for ky in range(ksize):
        for kx in range(ksize):
            t = xp[:, :, ky:ky + Ho * stride:stride, kx:kx + Wo * stride:stride]
            taps.append(t.reshape(C, N * Ho * Wo))
    return jnp.concatenate(taps, axis=0), Ho, Wo


def _w3x3_to_mat(w):
    """(Cout, Cin, 3, 3) -> (Cout, 9*Cin), matching im2col_cfirst row order."""
    Cout, Cin, KH, KW = w.shape
    return jnp.transpose(w, (0, 2, 3, 1)).reshape(Cout, KH * KW * Cin)


def _bn_coeffs(stats, count, gamma, beta):
    """Fold training-mode BatchNorm (batch stats, biased var) into scale/shift."""
    s = jnp.sum(stats, axis=0)             # (2, R, 1): cross-tile reduction (tiny)
    mean = s[0] / count
    var = s[1] / count - mean * mean       # one-pass moments
    a = gamma.reshape(-1, 1).astype(jnp.float32) * jax.lax.rsqrt(var + EPS)
    b = beta.reshape(-1, 1).astype(jnp.float32) - a * mean
    return a, b


def init_basic_block(key, in_planes, planes, stride):
    k1, k2, k3 = jax.random.split(key, 3)
    params = {
        "w1": 0.1 * jax.random.normal(k1, (planes, in_planes, 3, 3), jnp.float32),
        "g1": jnp.ones((planes,), jnp.float32),
        "b1": jnp.zeros((planes,), jnp.float32),
        "w2": 0.1 * jax.random.normal(k2, (planes, planes, 3, 3), jnp.float32),
        "g2": jnp.ones((planes,), jnp.float32),
        "b2": jnp.zeros((planes,), jnp.float32),
        "stride": stride,
    }
    if stride != 1 or in_planes != planes:
        params["w_sc"] = 0.1 * jax.random.normal(k3, (planes, in_planes, 1, 1), jnp.float32)
        params["g_sc"] = jnp.ones((planes,), jnp.float32)
        params["b_sc"] = jnp.zeros((planes,), jnp.float32)
    return params


def basic_block_forward(params, x_nchw, *, block_m=256, compute_dtype=jnp.bfloat16):
    """BasicBlock forward: (N, Cin, H, W) f32 -> (N, planes, Ho, Wo) f32."""
    stride = params["stride"]
    planes = params["w1"].shape[0]
    has_proj = "w_sc" in params

    # Channel-first internal layout: 2-D tensors are (C, N*H*W) so the big
    # batch*spatial axis sits in lanes (>=128) and C sits in sublanes.
    xc = jnp.transpose(x_nchw.astype(jnp.float32), (1, 0, 2, 3))   # (Cin, N, H, W)
    cin, n, h, w = xc.shape

    # --- conv1 (3x3, stride) [+ fused 1x1 projection] + partial moments -----
    # TODO(synk): im2col still materializes the 9x patch array in HBM; in-kernel
    # 9-tap accumulation was not adopted because at CIFAR widths (W <= 32) it
    # would force a narrow, non-lane-dense W-minor layout.
    p1, ho, wo = im2col_cfirst(xc, 3, stride, 1)
    m = n * ho * wo
    w1m = _w3x3_to_mat(params["w1"])
    if has_proj:
        # The 1x1 stride-s projection reads exactly the centre tap (ky=kx=1) of
        # the 3x3 im2col, so embed w_sc in those columns and stack under w1:
        # one MXU pass over the VMEM-resident patch tile yields conv1 AND the
        # projection shortcut.
        wsc_full = jnp.zeros_like(w1m).at[:, 4 * cin:5 * cin].set(
            params["w_sc"].reshape(planes, cin))
        wk = jnp.concatenate([w1m, wsc_full], axis=0)          # (2*planes, 9*cin)
    else:
        wk = w1m
    raw1, st1 = matmul_with_stats(p1.astype(compute_dtype),
                                  wk.astype(compute_dtype), block_m=block_m)

    a1, b1 = _bn_coeffs(st1[:, :, :planes], m, params["g1"], params["b1"])

    # bn1 + relu applied in f32 by XLA so it fuses into the conv2 im2col gather
    # (keeps the conv2 zero spatial padding exactly zero).
    hid = jnp.maximum(a1 * raw1[:planes] + b1, 0.0).reshape(planes, n, ho, wo)

    # --- conv2 (3x3, stride 1) + partial moments -----------------------------
    p2, _, _ = im2col_cfirst(hid, 3, 1, 1)
    raw2, st2 = matmul_with_stats(p2.astype(compute_dtype),
                                  _w3x3_to_mat(params["w2"]).astype(compute_dtype),
                                  block_m=block_m)
    a2, b2 = _bn_coeffs(st2, m, params["g2"], params["b2"])

    # --- shortcut coefficients ------------------------------------------------
    if has_proj:
        a_r, b_r = _bn_coeffs(st1[:, :, planes:], m, params["g_sc"], params["b_sc"])
        res, res_row = raw1, 1          # rows [planes:2*planes] via BlockSpec index
    else:
        a_r = jnp.ones((planes, 1), jnp.float32)
        b_r = jnp.zeros((planes, 1), jnp.float32)
        res, res_row = xc.reshape(cin, n * h * w), 0

    # --- bn2 + residual add + relu -------------------------------------------
    out = bn_add_relu(raw2, res, a2, b2, a_r, b_r,
                      res_block_row=res_row, block_m=block_m)
    out = out.reshape(planes, n, ho, wo)
    # NCHW only at the module boundary (a chained ResNet would stay channel-first).
    return jnp.transpose(out, (1, 0, 2, 3))


# -------------------------- pure-JAX reference ----------------------------- #

def _ref_bn(x, g, b):
    mean = jnp.mean(x, axis=(0, 2, 3), keepdims=True)
    var = jnp.mean(jnp.square(x - mean), axis=(0, 2, 3), keepdims=True)
    return (x - mean) * jax.lax.rsqrt(var + EPS) * g.reshape(1, -1, 1, 1) + b.reshape(1, -1, 1, 1)


def ref_forward(params, x_nchw):
    stride = params["stride"]
    dn = ("NCHW", "OIHW", "NCHW")
    conv = lambda x, w, s, pad: jax.lax.conv_general_dilated(
        x, w, (s, s), ((pad, pad), (pad, pad)), dimension_numbers=dn)
    out = jax.nn.relu(_ref_bn(conv(x_nchw, params["w1"], stride, 1), params["g1"], params["b1"]))
    out = _ref_bn(conv(out, params["w2"], 1, 1), params["g2"], params["b2"])
    if "w_sc" in params:
        sc = _ref_bn(conv(x_nchw, params["w_sc"], stride, 0), params["g_sc"], params["b_sc"])
    else:
        sc = x_nchw
    return jax.nn.relu(out + sc)


# ---------------------------------- main ----------------------------------- #

if __name__ == "__main__":
    key = jax.random.PRNGKey(0)
    kx1, kx2, kp1, kp2 = jax.random.split(key, 4)

    # Config A: projection shortcut (stride=2, channels 4 -> 8)
    x_a = jax.random.normal(kx1, (2, 4, 16, 16), jnp.float32)
    params_a = init_basic_block(kp1, in_planes=4, planes=8, stride=2)
    ref_a = ref_forward(params_a, x_a)

    # f32 compute path: tight check of the kernel/BN-restructuring correctness.
    out_a32 = jax.block_until_ready(
        basic_block_forward(params_a, x_a, compute_dtype=jnp.float32))
    assert out_a32.shape == (2, 8, 8, 8)
    assert jnp.allclose(out_a32, ref_a, rtol=2e-4, atol=2e-4), "config A f32 mismatch"

    # bf16 MXU operands (performance default): looser tolerance reflects bf16
    # rounding of the matmul inputs only; stats/BN/ReLU stay f32.
    out_a16 = jax.block_until_ready(basic_block_forward(params_a, x_a))
    assert out_a16.shape == (2, 8, 8, 8)
    assert jnp.allclose(out_a16, ref_a, rtol=5e-2, atol=5e-2), "config A bf16 mismatch"

    # Config B: identity shortcut (stride=1); M = 512 with block_m=256 exercises
    # the multi-tile 'parallel' grid and the cross-tile moment reduction.
    x_b = jax.random.normal(kx2, (2, 8, 16, 16), jnp.float32)
    params_b = init_basic_block(kp2, in_planes=8, planes=8, stride=1)
    ref_b = ref_forward(params_b, x_b)

    out_b32 = jax.block_until_ready(
        basic_block_forward(params_b, x_b, compute_dtype=jnp.float32))
    assert out_b32.shape == (2, 8, 16, 16)
    assert jnp.allclose(out_b32, ref_b, rtol=2e-4, atol=2e-4), "config B f32 mismatch"

    out_b16 = jax.block_until_ready(basic_block_forward(params_b, x_b))
    assert out_b16.shape == (2, 8, 16, 16)
    assert jnp.allclose(out_b16, ref_b, rtol=5e-2, atol=5e-2), "config B bf16 mismatch"

    print("KERNEL_OK")
</pallas_src>

<mosaic_0001>
module attributes {stable_mosaic.version = 11 : i64} {
  func.func @_matmul_stats_kernel(%arg0: i32, %arg1: memref<36x128xf32, #tpu.memory_space<vmem>>, %arg2: memref<16x36xf32, #tpu.memory_space<vmem>>, %arg3: memref<16x128xf32, #tpu.memory_space<vmem>>, %arg4: memref<1x2x16x1xf32, #tpu.memory_space<vmem>>) attributes {dimension_semantics = [#tpu.dimension_semantics<parallel>], iteration_bounds = array<i64: 1>, scalar_prefetch = 0 : i64, scratch_operands = 0 : i64, tpu.core_type = #tpu.core_type<tc>, window_params = [{transform_indices = @transform_0, window_bounds = array<i64: 36, 128>}, {pipeline_mode = #tpu.pipeline_mode<synchronous>, transform_indices = @transform_1, window_bounds = array<i64: 16, 36>}, {transform_indices = @transform_2, window_bounds = array<i64: 16, 128>}, {transform_indices = @transform_3, window_bounds = array<i64: 1, 2, 16, 1>}]} {
    %c0 = arith.constant 0 : index
    %c0_0 = arith.constant 0 : index
    %0 = vector.load %arg2[%c0, %c0_0] : memref<16x36xf32, #tpu.memory_space<vmem>>, vector<16x36xf32>
    %c0_1 = arith.constant 0 : index
    %c0_2 = arith.constant 0 : index
    %1 = vector.load %arg1[%c0_1, %c0_2] : memref<36x128xf32, #tpu.memory_space<vmem>>, vector<36x128xf32>
    %cst = arith.constant dense<0.000000e+00> : vector<16x128xf32>
    %2 = tpu.matmul %0, %1, %cst {dimension_numbers = #tpu.dot_dimension_numbers<[1], [0], [0], [1], [0, 0, 1, 1], [], []>} : vector<16x36xf32>, vector<36x128xf32>, vector<16x128xf32> -> vector<16x128xf32>
    %c0_3 = arith.constant 0 : index
    %c0_4 = arith.constant 0 : index
    %3 = vector.load %arg3[%c0_3, %c0_4] : memref<16x128xf32, #tpu.memory_space<vmem>>, vector<16x128xf32>
    tpu.vector_store %arg3[%c0_3, %c0_4], %2 {strides = array<i32>} : memref<16x128xf32, #tpu.memory_space<vmem>>, vector<16x128xf32>,
    %cst_5 = arith.constant dense<0.000000e+00> : vector<16xf32>
    %4 = vector.multi_reduction <add>, %2, %cst_5 [1] : vector<16x128xf32> to vector<16xf32>
    %5 = vector.shape_cast %4 : vector<16xf32> to vector<16x1xf32>
    %c0_6 = arith.constant 0 : index
    %c0_7 = arith.constant 0 : index
    %c0_8 = arith.constant 0 : index
    %c0_9 = arith.constant 0 : index
    %6 = vector.load %arg4[%c0_6, %c0_7, %c0_8, %c0_9] : memref<1x2x16x1xf32, #tpu.memory_space<vmem>>, vector<1x1x16x1xf32>
    %7 = vector.shape_cast %6 : vector<1x1x16x1xf32> to vector<16x1xf32>
    %8 = vector.shape_cast %5 : vector<16x1xf32> to vector<1x1x16x1xf32>
    tpu.vector_store %arg4[%c0_6, %c0_7, %c0_8, %c0_9], %8 {strides = array<i32>} : memref<1x2x16x1xf32, #tpu.memory_space<vmem>>, vector<1x1x16x1xf32>,
    %9 = arith.mulf %2, %2 : vector<16x128xf32>
    %cst_10 = arith.constant dense<0.000000e+00> : vector<16xf32>
    %10 = vector.multi_reduction <add>, %9, %cst_10 [1] : vector<16x128xf32> to vector<16xf32>
    %11 = vector.shape_cast %10 : vector<16xf32> to vector<16x1xf32>
    %c0_11 = arith.constant 0 : index
    %c1 = arith.constant 1 : index
    %c0_12 = arith.constant 0 : index
    %c0_13 = arith.constant 0 : index
    %12 = vector.load %arg4[%c0_11, %c1, %c0_12, %c0_13] : memref<1x2x16x1xf32, #tpu.memory_space<vmem>>, vector<1x1x16x1xf32>
    %13 = vector.shape_cast %12 : vector<1x1x16x1xf32> to vector<16x1xf32>
    %14 = vector.shape_cast %11 : vector<16x1xf32> to vector<1x1x16x1xf32>
    tpu.vector_store %arg4[%c0_11, %c1, %c0_12, %c0_13], %14 {strides = array<i32>} : memref<1x2x16x1xf32, #tpu.memory_space<vmem>>, vector<1x1x16x1xf32>,
    return
  }
  func.func @transform_0(%arg0: i32) -> (i32, i32) {
    %c0_i32 = arith.constant 0 : i32
    %c0_i32_0 = arith.constant 0 : i32
    return %c0_i32, %arg0 : i32, i32
  }
  func.func @transform_1(%arg0: i32) -> (i32, i32) {
    %c0_i32 = arith.constant 0 : i32
    %c0_i32_0 = arith.constant 0 : i32
    %c0_i32_1 = arith.constant 0 : i32
    return %c0_i32, %c0_i32_0 : i32, i32
  }
  func.func @transform_2(%arg0: i32) -> (i32, i32) {
    %c0_i32 = arith.constant 0 : i32
    %c0_i32_0 = arith.constant 0 : i32
    return %c0_i32, %arg0 : i32, i32
  }
  func.func @transform_3(%arg0: i32) -> (i32, i32, i32, i32) {
    %c0_i32 = arith.constant 0 : i32
    %c0_i32_0 = arith.constant 0 : i32
    %c0_i32_1 = arith.constant 0 : i32
    %c0_i32_2 = arith.constant 0 : i32
    return %arg0, %c0_i32, %c0_i32_0, %c0_i32_1 : i32, i32, i32, i32
  }
}

</mosaic_0001>

<llo_original>
// kernel: tpu_custom_call.1
$region0: #{tpu_custom_call.1}
  #allocation0 [shape = 'u32[]', space=smem, size = 0x4, offset = 0x4, fixed_abs, tag = 'smem constant byte address 0x4 - core index']
  #allocation1 [shape = 'u32[144,128]{1,0:T(1,128)}', space=vmem, size = 0x12000, scoped, tag = 'internal scratch']
  %s0 = inlined_call_operand.hbm [shape: f32[36,128], index: 0, kind: input, shape index: {}]
  %s1 = inlined_call_operand.hbm [shape: f32[16,36], index: 1, kind: input, shape index: {}]
  %s2 = inlined_call_operand.hbm [shape: f32[16,128], index: 2, kind: output, shape index: {0}]
  %s3 = inlined_call_operand.vmem [shape: f32[1,2,16,1], index: 3, kind: output, shape index: {1}]
  %4 = xla_tuple %s2, %s3
  %s5 = sld [smem:[#allocation0]]
  $region34: #{tpu_custom_call.1} parent=0
    _
  %s7 = ssub.s32 1, %s5
  %s8 = scalar_select 0, %s7, %s5
  $region1: #{tpu_custom_call.1} parent=0
    #allocation2 [shape = 'u8[20480]{0}', space=vmem, size = 0x5000, scoped, tag = 'input window, operand 0, single buffered']
    #allocation3 [shape = 's32[1]{0}', space=sflag, size = 0x4, scoped, tag = 'scoped memory for tpu_custom_call.1']
    #allocation4 [shape = 's32[1]{0}', space=sflag, size = 0x4, scoped, tag = 'scoped memory for tpu_custom_call.1']
    #allocation5 [shape = 'u8[8192]{0}', space=vmem, size = 0x2000, scoped, tag = 'input window, operand 1, single buffered']
    #allocation6 [shape = 's32[1]{0}', space=sflag, size = 0x4, scoped, tag = 'scoped memory for tpu_custom_call.1']
    #allocation7 [shape = 'u8[8192]{0}', space=vmem, size = 0x2000, scoped, tag = 'output window, operand 0, single buffered']
    %9 = vsyncpa [#allocation3], 0
    %10 = vsyncpa [#allocation6], 0
    %11 = vsyncpa [#allocation4], 0
    // Predicated region
    $region2: #{tpu_custom_call.1} parent=1 // pred_check
      _
    $region3: #{tpu_custom_call.1} parent=1 // pred_check_branch
      %13 = sbr.rel (0) target = $region5
    $region4: #{tpu_custom_call.1} parent=1 // pred_region
      %s15 = ssub.s32 640, 640
      %16 = vsyncadd [#allocation3], %s15
      %s17 = sshll.u32 [#allocation2], 4
      %s18 = int_to_ptr.vmem [resolvable:$true] %s17
      %23 = dma.hbm_to_vmem [thread:$0]  %s0, 640, %s18, [#allocation3], 128, 128, 8
    $region5: #{tpu_custom_call.1} parent=1 // pred_fallthru
      _
    // Predicated region
    $region6: #{tpu_custom_call.1} parent=1 // pred_check
      _
    $region7: #{tpu_custom_call.1} parent=1 // pred_check_branch
      %25 = sbr.rel (0) target = $region9
    $region8: #{tpu_custom_call.1} parent=1 // pred_region
      %s27 = ssub.s32 256, 256
      %28 = vsyncadd [#allocation6], %s27
      %s29 = sshll.u32 [#allocation5], 4
      %s30 = int_to_ptr.vmem [resolvable:$true] %s29
      %35 = dma.hbm_to_vmem [thread:$0]  %s1, 256, %s30, [#allocation6], 128, 128, 8
    $region9: #{tpu_custom_call.1} parent=1 // pred_fallthru
      _
    // Predicated region
    $region10: #{tpu_custom_call.1} parent=1 // pred_check
      _
    $region11: #{tpu_custom_call.1} parent=1 // pred_check_branch
      %37 = sbr.rel (0) target = $region13
    $region12: #{tpu_custom_call.1} parent=1 // pred_region
      %38 = dma.done [#allocation3], 640
    $region13: #{tpu_custom_call.1} parent=1 // pred_fallthru
      _
    // Predicated region
    $region14: #{tpu_custom_call.1} parent=1 // pred_check
      _
    $region15: #{tpu_custom_call.1} parent=1 // pred_check_branch
      %40 = sbr.rel (0) target = $region17
    $region16: #{tpu_custom_call.1} parent=1 // pred_region
      %41 = dma.done [#allocation6], 256
    $region17: #{tpu_custom_call.1} parent=1 // pred_fallthru
      _
    %v42 = vld [vmem:[#allocation5] sm:$0xff]
    %v43 = vld [vmem:[#allocation5 + $0x8] sm:$0xff]
    %v44 = vld [vmem:[#allocation2] sm:$0xff]
    %v45 = vld [vmem:[#allocation2 + $0x8] sm:$0xff]
    %v46 = vld [vmem:[#allocation2 + $0x10] sm:$0xff]
    %v47 = vld [vmem:[#allocation2 + $0x18] sm:$0xff]
    %v48 = vld [vmem:[#allocation2 + $0x20] sm:$0xf]
    %vm49 = vcmask 293888
    %v51 = vsel %vm49, %v42, 0
    %v54 = vsel %vm49, %v43, 0
    %vm56 = vcmask 1043456
    %v58 = vsel %vm56, %v48, 0
    %60 = vmatprep.subr.mxu0 0.0
    %61 = vmatpush1.msra.mxu0 %v44
    %62 = vmatprep.subr.mxu0 0.0
    %63 = vmatpush1.msra.mxu0 %v45
    %64 = vmatprep.subr.mxu0 0.0
    %65 = vmatpush1.msra.mxu0 %v46
    %66 = vmatprep.subr.mxu0 0.0
    %67 = vmatpush1.msra.mxu0 %v47
    %68 = vmatprep.subr.mxu0 0.0
    %69 = vmatpush1.msra.mxu0 %v58
    %70 = vmatprep.subr.mxu0 0.0
    %71 = vmatpush1.msra.mxu0 0.0
    %72 = vmatprep.subr.mxu0 0.0
    %73 = vmatpush1.msra.mxu0 0.0
    %74 = vmatprep.subr.mxu0 0.0
    %75 = vmatpush1.msra.mxu0 0.0
    %76 = vmatprep.subr.mxu0 0.0
    %77 = vmatpush1.msra.mxu0 0.0
    %78 = vmatprep.subr.mxu0 0.0
    %79 = vmatpush1.msra.mxu0 0.0
    %80 = vmatprep.subr.mxu0 0.0
    %81 = vmatpush1.msra.mxu0 0.0
    %82 = vmatprep.subr.mxu0 0.0
    %83 = vmatpush1.msra.mxu0 0.0
    %84 = vmatprep.subr.mxu0 0.0
    %85 = vmatpush1.msra.mxu0 0.0
    %86 = vmatprep.subr.mxu0 0.0
    %87 = vmatpush1.msra.mxu0 0.0
    %88 = vmatprep.subr.mxu0 0.0
    %89 = vmatpush1.msra.mxu0 0.0
    %90 = vmatprep.subr.mxu0 0.0
    %91 = vmatpush1.msra.mxu0 0.0
    %92 = vmatprep.subr.mxu0 0.0
    %93 = vmatpush1.msra.mxu0 0.0
    %94 = vmatprep.subr.mxu0 0.0
    %95 = vmatpush1.msra.mxu0 0.0
    %96 = vmatprep.subr.mxu0 0.0
    %97 = vmatpush1.msra.mxu0 0.0
    %98 = vmatprep.subr.mxu0 0.0
    %99 = vmatpush1.msra.mxu0 0.0
    %100 = vmatprep.subr.mxu0 0.0
    %101 = vmatpush1.msra.mxu0 0.0
    %102 = vmatprep.subr.mxu0 0.0
    %103 = vmatpush1.msra.mxu0 0.0
    %104 = vmatprep.subr.mxu0 0.0
    %105 = vmatpush1.msra.mxu0 0.0
    %106 = vmatprep.subr.mxu0 0.0
    %107 = vmatpush1.msra.mxu0 0.0
    %108 = vmatprep.subr.mxu0 0.0
    %109 = vmatpush1.msra.mxu0 0.0
    %110 = vmatprep.subr.mxu0 0.0
    %111 = vmatpush1.msra.mxu0 0.0
    %112 = vmatprep.subr.mxu0 0.0
    %113 = vmatpush1.msra.mxu0 0.0
    %114 = vmatprep.subr.mxu0 0.0
    %115 = vmatpush1.msra.mxu0 0.0
    %116 = vmatprep.subr.mxu0 0.0
    %117 = vmatpush1.msra.mxu0 0.0
    %118 = vmatprep.subr.mxu0 0.0
    %119 = vmatpush1.msra.mxu0 0.0
    %120 = vmatprep.subr.mxu0 0.0
    %121 = vmatpush1.msra.mxu0 0.0
    %122 = vmatprep.subr.mxu0 0.0
    %123 = vmatpush1.msra.mxu0 0.0
    %124 = vmatprep.mubr.f32.mxu0 0.0
    %125 = vmatmul.mubr.f32.gmra.mrb[0].mxu0 %v51
    %v126 = vpop.f32.mrb[0].mxu0
    %v127 = vadd.f32 0.0, %v126
    %v128 = vpop.f32.mrb[0].mxu0
    %129 = vmatprep.mubr.f32.mxu0 0.0
    %130 = vmatmul.mubr.f32.gmra.mrb[0].mxu0 %v54
    %v131 = vpop.f32.mrb[0].mxu0
    %v132 = vadd.f32 0.0, %v131
    %v133 = vpop.f32.mrb[0].mxu0
    %134 = vdwg.mxu0
    %135 = vst [vmem:[#allocation7] sm:$0xff] %v127
    %136 = vst [vmem:[#allocation7 + $0x8] sm:$0xff] %v132
    %137 = vadd.xlane.f32.xlu0 %v127
    %v138 = vpop.xlane.xlu0 %137
    %139 = vadd.xlane.f32.xlu0 %v132
    %v140 = vpop.xlane.xlu0 %139
    %vm141 = vcmask 7168
    %142 = vst.msk [vmem:[%s3] sm:$0xff] %vm141, %v138
    %143 = vst.msk [vmem:[%s3 + $0x8] sm:$0xff] %vm141, %v140
    %v144 = vmul.f32 %v127, %v127
    %v145 = vmul.f32 %v132, %v132
    %146 = vadd.xlane.f32.xlu0 %v144
    %v147 = vpop.xlane.xlu0 %146
    %148 = vadd.xlane.f32.xlu0 %v145
    %v149 = vpop.xlane.xlu0 %148
    %s150 = scalar_lea.vmem %s3, 16
    %151 = vst.msk [vmem:[%s150] sm:$0xff] %vm141, %v147
    %152 = vst.msk [vmem:[%s150 + $0x8] sm:$0xff] %vm141, %v149
    // Predicated region
    $region18: #{tpu_custom_call.1} parent=1 // pred_check
      _
    $region19: #{tpu_custom_call.1} parent=1 // pred_check_branch
      %154 = sbr.rel (0) target = $region21
    $region20: #{tpu_custom_call.1} parent=1 // pred_region
      %s156 = ssub.s32 256, 256
      %157 = vsyncadd [#allocation4], %s156
      %s158 = sshll.u32 [#allocation7], 4
      %s159 = int_to_ptr.vmem [resolvable:$true] %s158
      %164 = dma.vmem_to_hbm [thread:$0]  %s159, 256, %s2, [#allocation4], 128, 128, 8
    $region21: #{tpu_custom_call.1} parent=1 // pred_fallthru
      _
    // Predicated region
    $region22: #{tpu_custom_call.1} parent=1 // pred_check
      _
    $region23: #{tpu_custom_call.1} parent=1 // pred_check_branch
      %166 = sbr.rel (0) target = $region25
    $region24: #{tpu_custom_call.1} parent=1 // pred_region
      _
    $region25: #{tpu_custom_call.1} parent=1 // pred_fallthru
      _
    // Predicated region
    $region26: #{tpu_custom_call.1} parent=1 // pred_check
      _
    $region27: #{tpu_custom_call.1} parent=1 // pred_check_branch
      %168 = sbr.rel (0) target = $region29
    $region28: #{tpu_custom_call.1} parent=1 // pred_region
      %169 = dma.done [#allocation4], 256
    $region29: #{tpu_custom_call.1} parent=1 // pred_fallthru
      _
    // Predicated region
    $region30: #{tpu_custom_call.1} parent=1 // pred_check
      _
    $region31: #{tpu_custom_call.1} parent=1 // pred_check_branch
      %171 = sbr.rel (0) target = $region33
    $region32: #{tpu_custom_call.1} parent=1 // pred_region
      _
    $region33: #{tpu_custom_call.1} parent=1 // pred_fallthru
      _
    %172 = vsyncpa [#allocation3], 1
    %173 = vsyncpa [#allocation6], 1
    %174 = vsyncpa [#allocation4], 1

</llo_original>
